<compile_context>
chip_gen: v7x
topology: tpu7x:2x2x1
jax: 0.10.0
libtpu: 0.0.40
codegen_flags: <defaults>
</compile_context>

<pallas_src>
import functools

import jax
import jax.numpy as jnp
from jax.experimental import pallas as pl
from jax.experimental.pallas import tpu as pltpu


def bert_embeddings_kernel(
        w_ids_ref,        # scalar prefetch: (B, S_pad) int32 word ids in SMEM
        tt_ids_ref,       # (TOK, 1) int32 token-type ids (VMEM block)
        pos_ref,          # (TOK, H) position-embedding rows for this seq tile
        type_ref,         # (TV, H) full token-type embedding table (VMEM resident)
        gb_ref,           # (2, H)  LayerNorm gamma (row 0) / beta (row 1) (VMEM resident)
        word_hbm_ref,     # (V, H)  word-embedding table, left in HBM (pl.ANY)
        out_ref,          # (TOK, H) output block
        wbuf_ref,         # (2, TOK, H) VMEM scratch: double-buffered gathered word rows
        sem_ref,          # (2,) DMA semaphores, one per scratch slot
        *, eps, tok, type_vocab):
    b = pl.program_id(0)
    s = pl.program_id(1)
    ns = pl.num_programs(1)
    slot = s % 2

    def issue(batch_idx, seq_tile, dst_slot):
        base = seq_tile * tok

        @pl.loop(0, tok)
        def _(i):
            row = w_ids_ref[batch_idx, base + i]          # SMEM scalar read (before any wait)
            pltpu.make_async_copy(
                word_hbm_ref.at[pl.ds(row, 1)],
                wbuf_ref.at[dst_slot, pl.ds(i, 1)],
                sem_ref.at[dst_slot]).start()

    # Prime: the first seq tile of each batch row gathers into slot 0.
    # (No cross-batch-row prefetch: keeps semaphores balanced per-core under megacore.)
    @pl.when(s == 0)
    def _():
        issue(b, 0, 0)

    # Prefetch the next seq tile of this batch row into the other slot while this
    # tile computes (double buffering across grid steps).
    @pl.when(s + 1 < ns)
    def _():
        issue(b, s + 1, 1 - slot)

    # Wait for this tile's gathered word rows (one wait per issued row copy).
    @pl.loop(0, tok)
    def _(i):
        pltpu.make_async_copy(
            word_hbm_ref.at[pl.ds(0, 1)],
            wbuf_ref.at[slot, pl.ds(i, 1)],
            sem_ref.at[slot]).wait()

    # word + position embeddings (accumulate in f32)
    x = wbuf_ref[slot].astype(jnp.float32) + pos_ref[...].astype(jnp.float32)

    # token-type embeddings: type_vocab is tiny (2 for BERT) -> VPU select against the
    # resident table, no per-token gather DMA.
    t = tt_ids_ref[...]                        # (TOK, 1) int32
    ttab = type_ref[...].astype(jnp.float32)   # (TV, H)
    if type_vocab == 1:
        x = x + ttab[0:1, :]
    elif type_vocab == 2:
        x = x + jnp.where(t == 0, ttab[0:1, :], ttab[1:2, :])   # single select
    else:
        for v in range(type_vocab):            # static, tiny unroll
            x = x + jnp.where(t == v, 1.0, 0.0) * ttab[v:v + 1, :]

    # LayerNorm over the hidden dimension
    mean = jnp.mean(x, axis=-1, keepdims=True)
    var = jnp.mean(jnp.square(x - mean), axis=-1, keepdims=True)
    xn = (x - mean) * jax.lax.rsqrt(var + eps)

    gb = gb_ref[...].astype(jnp.float32)
    y = xn * gb[0:1, :] + gb[1:2, :]

    # TODO(synk): dropout is identity in eval mode; training-mode dropout not implemented.
    out_ref[...] = y.astype(out_ref.dtype)


def bert_embeddings(input_ids, token_type_ids,
                    word_table, type_table, pos_table, gamma, beta,
                    *, eps=1e-12, past_key_values_length=0, tok=None):
    B, S = input_ids.shape
    H = word_table.shape[1]
    TV = type_table.shape[0]

    if token_type_ids is None:
        token_type_ids = jnp.zeros((B, S), jnp.int32)

    # Token tile size: multiple of 8 sublanes, capped at 256 (fits comfortably in the
    # default scoped-VMEM limit on v5e/v6e/v7x even at H=1024, including double buffers).
    if tok is None:
        tok = min(256, 8 * ((S + 7) // 8))
    num_s_tiles = (S + tok - 1) // tok
    s_pad = num_s_tiles * tok
    pad = s_pad - S

    # Scalar-prefetched word ids (SMEM) drive the in-kernel DMA gather; padded tail
    # uses id 0 (always a valid row) and is sliced off the output.
    w_ids = jnp.pad(input_ids.astype(jnp.int32), ((0, 0), (0, pad)))
    tt_col = jnp.pad(token_type_ids.astype(jnp.int32),
                     ((0, 0), (0, pad))).reshape(B * s_pad, 1)

    # Default absolute positions: past_kv + arange(S), i.e. a static slice of the
    # position table, fed as a per-seq-tile blocked input.
    # TODO(synk): arbitrary user-provided position_ids / inputs_embeds paths are not
    # kernelized; only the module's default (position_ids=None, input_ids given) path is.
    pos_rows = jax.lax.slice_in_dim(pos_table, past_key_values_length,
                                    past_key_values_length + S, axis=0)
    pos_rows = jnp.pad(pos_rows, ((0, pad), (0, 0)))

    gb = jnp.stack([gamma, beta])   # (2, H)

    grid_spec = pltpu.PrefetchScalarGridSpec(
        num_scalar_prefetch=1,                      # w_ids -> SMEM
        grid=(B, num_s_tiles),
        in_specs=[
            # token-type ids, one (TOK, 1) column per tile
            pl.BlockSpec((tok, 1), lambda b, s, w: (b * num_s_tiles + s, 0)),
            # position rows, blocked by seq tile (auto-pipelined)
            pl.BlockSpec((tok, H), lambda b, s, w: (s, 0)),
            # tiny token-type table: VMEM resident (same block every step)
            pl.BlockSpec((TV, H), lambda b, s, w: (0, 0)),
            # LayerNorm gamma/beta: VMEM resident
            pl.BlockSpec((2, H), lambda b, s, w: (0, 0)),
            # word table stays in HBM; rows DMA-gathered manually in the kernel
            pl.BlockSpec(memory_space=pl.ANY),
        ],
        out_specs=pl.BlockSpec((tok, H), lambda b, s, w: (b * num_s_tiles + s, 0)),
        scratch_shapes=[
            pltpu.VMEM((2, tok, H), word_table.dtype),
            pltpu.SemaphoreType.DMA((2,)),
        ],
    )

    out_flat = pl.pallas_call(
        functools.partial(bert_embeddings_kernel, eps=eps, tok=tok, type_vocab=TV),
        grid_spec=grid_spec,
        out_shape=jax.ShapeDtypeStruct((B * s_pad, H), word_table.dtype),
        compiler_params=pltpu.CompilerParams(
            dimension_semantics=("parallel", "arbitrary")),
    )(w_ids, tt_col, pos_rows, type_table, gb, word_table)

    return out_flat.reshape(B, s_pad, H)[:, :S, :]


def reference_bert_embeddings(input_ids, token_type_ids,
                              word_table, type_table, pos_table, gamma, beta,
                              eps=1e-12, past_key_values_length=0):
    _, S = input_ids.shape
    pos = past_key_values_length + jnp.arange(S)
    x = (word_table[input_ids]
         + type_table[token_type_ids]
         + pos_table[pos][None, :, :])
    mean = jnp.mean(x, axis=-1, keepdims=True)
    var = jnp.mean(jnp.square(x - mean), axis=-1, keepdims=True)
    return (x - mean) * jax.lax.rsqrt(var + eps) * gamma + beta


if __name__ == "__main__":
    # Small synthetic "config"
    vocab_size = 100
    hidden_size = 128
    max_position_embeddings = 64
    type_vocab_size = 2
    pad_token_id = 0
    layer_norm_eps = 1e-12
    batch, seq = 2, 12   # seq deliberately NOT a multiple of the tile -> exercises padding

    key = jax.random.PRNGKey(0)
    k_w, k_t, k_p, k_ids, k_tt = jax.random.split(key, 5)

    word_table = 0.02 * jax.random.normal(k_w, (vocab_size, hidden_size), jnp.float32)
    word_table = word_table.at[pad_token_id].set(0.0)   # mimic nn.Embedding padding_idx
    type_table = 0.02 * jax.random.normal(k_t, (type_vocab_size, hidden_size), jnp.float32)
    pos_table = 0.02 * jax.random.normal(k_p, (max_position_embeddings, hidden_size), jnp.float32)
    gamma = jnp.ones((hidden_size,), jnp.float32)
    beta = jnp.zeros((hidden_size,), jnp.float32)

    input_ids = jax.random.randint(k_ids, (batch, seq), 0, vocab_size, dtype=jnp.int32)
    token_type_ids = jax.random.randint(k_tt, (batch, seq), 0, type_vocab_size, dtype=jnp.int32)

    # tok=8 forces multiple seq tiles so the double-buffered gather path and the
    # padded-tail path are both exercised at small shapes.
    out = bert_embeddings(input_ids, token_type_ids,
                          word_table, type_table, pos_table, gamma, beta,
                          eps=layer_norm_eps, tok=8)
    out = jax.block_until_ready(out)

    ref = reference_bert_embeddings(input_ids, token_type_ids,
                                    word_table, type_table, pos_table, gamma, beta,
                                    eps=layer_norm_eps)
    assert out.shape == (batch, seq, hidden_size)
    assert jnp.allclose(out, ref, atol=1e-5, rtol=1e-5), float(jnp.max(jnp.abs(out - ref)))
    print("KERNEL_OK")
</pallas_src>

<mosaic_0001>
module attributes {stable_mosaic.version = 11 : i64} {
  func.func @bert_embeddings_kernel(%arg0: i32, %arg1: i32, %arg2: memref<2x16xi32, #tpu.memory_space<smem>>, %arg3: memref<8x1xi32, #tpu.memory_space<vmem>>, %arg4: memref<8x128xf32, #tpu.memory_space<vmem>>, %arg5: memref<2x128xf32, #tpu.memory_space<vmem>>, %arg6: memref<2x128xf32, #tpu.memory_space<vmem>>, %arg7: memref<100x128xf32, #tpu.memory_space<any>>, %arg8: memref<8x128xf32, #tpu.memory_space<vmem>>, %arg9: memref<2x8x128xf32, #tpu.memory_space<vmem>>, %arg10: memref<2x!tpu.dma_semaphore, #tpu.memory_space<semaphore_mem>>) attributes {dimension_semantics = [#tpu.dimension_semantics<parallel>, #tpu.dimension_semantics<arbitrary>], iteration_bounds = array<i64: 2, 2>, scalar_prefetch = 1 : i64, scratch_operands = 2 : i64, tpu.core_type = #tpu.core_type<tc>, window_params = [{transform_indices = @transform_0, window_bounds = array<i64: 8, 1>}, {transform_indices = @transform_1, window_bounds = array<i64: 8, 128>}, {pipeline_mode = #tpu.pipeline_mode<synchronous>, transform_indices = @transform_2, window_bounds = array<i64: 2, 128>}, {pipeline_mode = #tpu.pipeline_mode<synchronous>, transform_indices = @transform_3, window_bounds = array<i64: 2, 128>}, {}, {transform_indices = @transform_5, window_bounds = array<i64: 8, 128>}]} {
    %c2_i32 = arith.constant 2 : i32
    %c0_i32 = arith.constant 0 : i32
    %0 = arith.cmpi eq, %c2_i32, %c0_i32 : i32
    %c1_i32 = arith.constant 1 : i32
    %1 = arith.select %0, %c1_i32, %c2_i32 : i32
    %2 = arith.remsi %arg1, %1 : i32
    %c0_i32_0 = arith.constant 0 : i32
    %3 = arith.cmpi ne, %2, %c0_i32_0 : i32
    %c0_i32_1 = arith.constant 0 : i32
    %4 = arith.cmpi slt, %2, %c0_i32_1 : i32
    %c0_i32_2 = arith.constant 0 : i32
    %5 = arith.cmpi slt, %1, %c0_i32_2 : i32
    %6 = arith.xori %4, %5 : i1
    %7 = arith.andi %6, %3 : i1
    %8 = arith.addi %2, %1 : i32
    %9 = arith.select %7, %8, %2 : i32
    %c0_i32_3 = arith.constant 0 : i32
    %10 = arith.cmpi eq, %arg1, %c0_i32_3 : i32
    %11 = arith.extui %10 : i1 to i32
    %c0_i32_4 = arith.constant 0 : i32
    %12 = arith.cmpi ne, %11, %c0_i32_4 : i32
    scf.if %12 {
      %c0_i32_27 = arith.constant 0 : i32
      %c8_i32_28 = arith.constant 8 : i32
      %63 = arith.addi %c0_i32_27, %c8_i32_28 : i32
      %c1_i32_29 = arith.constant 1 : i32
      scf.for %arg11 = %c0_i32_27 to %63 step %c1_i32_29  : i32 {
        %c1_i32_31 = arith.constant 1 : i32
        %64 = arith.muli %arg11, %c1_i32_31 : i32
        %c0_i32_32 = arith.constant 0 : i32
        %65 = arith.addi %c0_i32_32, %64 : i32
        %c0_i32_33 = arith.constant 0 : i32
        %66 = arith.addi %c0_i32_33, %65 : i32
        %67 = arith.index_cast %arg0 : i32 to index
        %68 = arith.index_cast %66 : i32 to index
        %69 = memref.load %arg2[%67, %68] : memref<2x16xi32, #tpu.memory_space<smem>>
        %c0_i32_34 = arith.constant 0 : i32
        %c0_i32_35 = arith.constant 0 : i32
        %c0_i32_36 = arith.constant 0 : i32
        %70 = tpu.memref_slice %arg7[%69, %c0_i32_36] : memref<100x128xf32, #tpu.memory_space<any>> -> memref<1x128xf32, #tpu.memory_space<any>>
        %c0_i32_37 = arith.constant 0 : i32
        %71 = tpu.memref_slice %arg9[%c0_i32_34, %65, %c0_i32_37] : memref<2x8x128xf32, #tpu.memory_space<vmem>> -> memref<1x1x128xf32, #tpu.memory_space<vmem>>
        %72 = tpu.memref_squeeze %71 : memref<1x1x128xf32, #tpu.memory_space<vmem>> -> memref<1x128xf32, #tpu.memory_space<vmem>>
        %73 = tpu.memref_slice %arg10[%c0_i32_35] : memref<2x!tpu.dma_semaphore, #tpu.memory_space<semaphore_mem>> -> memref<1x!tpu.dma_semaphore, #tpu.memory_space<semaphore_mem>>
        %74 = tpu.memref_squeeze %73 : memref<1x!tpu.dma_semaphore, #tpu.memory_space<semaphore_mem>> -> memref<!tpu.dma_semaphore, #tpu.memory_space<semaphore_mem>>
        tpu.enqueue_dma source(%70 : memref<1x128xf32, #tpu.memory_space<any>>) target(%72 : memref<1x128xf32, #tpu.memory_space<vmem>>) target_semaphore(%74 : memref<!tpu.dma_semaphore, #tpu.memory_space<semaphore_mem>>)
      }
      %c8_i32_30 = arith.constant 8 : i32
    } else {
    }
    %c1_i32_5 = arith.constant 1 : i32
    %13 = arith.addi %arg1, %c1_i32_5 : i32
    %c2_i32_6 = arith.constant 2 : i32
    %14 = arith.cmpi slt, %13, %c2_i32_6 : i32
    %15 = arith.extui %14 : i1 to i32
    %c0_i32_7 = arith.constant 0 : i32
    %16 = arith.cmpi ne, %15, %c0_i32_7 : i32
    scf.if %16 {
      %c1_i32_27 = arith.constant 1 : i32
      %63 = arith.addi %arg1, %c1_i32_27 : i32
      %c1_i32_28 = arith.constant 1 : i32
      %64 = arith.subi %c1_i32_28, %9 : i32
      %c8_i32_29 = arith.constant 8 : i32
      %65 = arith.muli %63, %c8_i32_29 : i32
      %c0_i32_30 = arith.constant 0 : i32
      %c8_i32_31 = arith.constant 8 : i32
      %66 = arith.addi %c0_i32_30, %c8_i32_31 : i32
      %c1_i32_32 = arith.constant 1 : i32
      scf.for %arg11 = %c0_i32_30 to %66 step %c1_i32_32  : i32 {
        %c1_i32_34 = arith.constant 1 : i32
        %67 = arith.muli %arg11, %c1_i32_34 : i32
        %c0_i32_35 = arith.constant 0 : i32
        %68 = arith.addi %c0_i32_35, %67 : i32
        %69 = arith.addi %65, %68 : i32
        %70 = arith.index_cast %arg0 : i32 to index
        %71 = arith.index_cast %69 : i32 to index
        %72 = memref.load %arg2[%70, %71] : memref<2x16xi32, #tpu.memory_space<smem>>
        %c0_i32_36 = arith.constant 0 : i32
        %73 = tpu.memref_slice %arg7[%72, %c0_i32_36] : memref<100x128xf32, #tpu.memory_space<any>> -> memref<1x128xf32, #tpu.memory_space<any>>
        %c0_i32_37 = arith.constant 0 : i32
        %74 = tpu.memref_slice %arg9[%64, %68, %c0_i32_37] : memref<2x8x128xf32, #tpu.memory_space<vmem>> -> memref<1x1x128xf32, #tpu.memory_space<vmem>>
        %75 = tpu.memref_squeeze %74 : memref<1x1x128xf32, #tpu.memory_space<vmem>> -> memref<1x128xf32, #tpu.memory_space<vmem>>
        %76 = tpu.memref_slice %arg10[%64] : memref<2x!tpu.dma_semaphore, #tpu.memory_space<semaphore_mem>> -> memref<1x!tpu.dma_semaphore, #tpu.memory_space<semaphore_mem>>
        %77 = tpu.memref_squeeze %76 : memref<1x!tpu.dma_semaphore, #tpu.memory_space<semaphore_mem>> -> memref<!tpu.dma_semaphore, #tpu.memory_space<semaphore_mem>>
        tpu.enqueue_dma source(%73 : memref<1x128xf32, #tpu.memory_space<any>>) target(%75 : memref<1x128xf32, #tpu.memory_space<vmem>>) target_semaphore(%77 : memref<!tpu.dma_semaphore, #tpu.memory_space<semaphore_mem>>)
      }
      %c8_i32_33 = arith.constant 8 : i32
    } else {
    }
    %c0_i32_8 = arith.constant 0 : i32
    %c8_i32 = arith.constant 8 : i32
    %17 = arith.addi %c0_i32_8, %c8_i32 : i32
    %c1_i32_9 = arith.constant 1 : i32
    scf.for %arg11 = %c0_i32_8 to %17 step %c1_i32_9  : i32 {
      %c1_i32_27 = arith.constant 1 : i32
      %63 = arith.muli %arg11, %c1_i32_27 : i32
      %c0_i32_28 = arith.constant 0 : i32
      %64 = arith.addi %c0_i32_28, %63 : i32
      %c0_i32_29 = arith.constant 0 : i32
      %c0_i32_30 = arith.constant 0 : i32
      %65 = tpu.memref_slice %arg7[%c0_i32_29, %c0_i32_30] : memref<100x128xf32, #tpu.memory_space<any>> -> memref<1x128xf32, #tpu.memory_space<any>>
      %c0_i32_31 = arith.constant 0 : i32
      %66 = tpu.memref_slice %arg9[%9, %64, %c0_i32_31] : memref<2x8x128xf32, #tpu.memory_space<vmem>> -> memref<1x1x128xf32, #tpu.memory_space<vmem>>
      %67 = tpu.memref_squeeze %66 : memref<1x1x128xf32, #tpu.memory_space<vmem>> -> memref<1x128xf32, #tpu.memory_space<vmem>>
      %68 = tpu.memref_slice %arg10[%9] : memref<2x!tpu.dma_semaphore, #tpu.memory_space<semaphore_mem>> -> memref<1x!tpu.dma_semaphore, #tpu.memory_space<semaphore_mem>>
      %69 = tpu.memref_squeeze %68 : memref<1x!tpu.dma_semaphore, #tpu.memory_space<semaphore_mem>> -> memref<!tpu.dma_semaphore, #tpu.memory_space<semaphore_mem>>
      tpu.wait_dma2 semaphore(%69 : memref<!tpu.dma_semaphore, #tpu.memory_space<semaphore_mem>>) src(%65 : memref<1x128xf32, #tpu.memory_space<any>>) dst(%67 : memref<1x128xf32, #tpu.memory_space<vmem>>)
    }
    %c8_i32_10 = arith.constant 8 : i32
    %18 = arith.index_cast %9 : i32 to index
    %c0 = arith.constant 0 : index
    %c0_11 = arith.constant 0 : index
    %19 = vector.load %arg9[%18, %c0, %c0_11] : memref<2x8x128xf32, #tpu.memory_space<vmem>>, vector<1x8x128xf32>
    %20 = vector.shape_cast %19 : vector<1x8x128xf32> to vector<8x128xf32>
    %c0_12 = arith.constant 0 : index
    %c0_13 = arith.constant 0 : index
    %21 = vector.load %arg4[%c0_12, %c0_13] : memref<8x128xf32, #tpu.memory_space<vmem>>, vector<8x128xf32>
    %22 = arith.addf %20, %21 : vector<8x128xf32>
    %c0_14 = arith.constant 0 : index
    %c0_15 = arith.constant 0 : index
    %23 = vector.load %arg3[%c0_14, %c0_15] : memref<8x1xi32, #tpu.memory_space<vmem>>, vector<8x1xi32>
    %c0_16 = arith.constant 0 : index
    %c0_17 = arith.constant 0 : index
    %24 = vector.load %arg5[%c0_16, %c0_17] : memref<2x128xf32, #tpu.memory_space<vmem>>, vector<2x128xf32>
    %c0_i32_18 = arith.constant 0 : i32
    %25 = vector.broadcast %c0_i32_18 : i32 to vector<8x1xi32>
    %26 = arith.cmpi eq, %23, %25 : vector<8x1xi32>
    %27 = vector.extract_strided_slice %24 {offsets = [0, 0], sizes = [1, 128], strides = [1, 1]} : vector<2x128xf32> to vector<1x128xf32>
    %28 = vector.extract_strided_slice %24 {offsets = [1, 0], sizes = [1, 128], strides = [1, 1]} : vector<2x128xf32> to vector<1x128xf32>
    %29 = vector.shape_cast %26 : vector<8x1xi1> to vector<8x1xi1>
    %30 = vector.broadcast %29 : vector<8x1xi1> to vector<8x128xi1>
    %31 = vector.shape_cast %27 : vector<1x128xf32> to vector<1x128xf32>
    %32 = vector.broadcast %31 : vector<1x128xf32> to vector<8x128xf32>
    %33 = vector.shape_cast %28 : vector<1x128xf32> to vector<1x128xf32>
    %34 = vector.broadcast %33 : vector<1x128xf32> to vector<8x128xf32>
    %35 = arith.select %30, %32, %34 : vector<8x128xi1>, vector<8x128xf32>
    %36 = arith.addf %22, %35 : vector<8x128xf32>
    %cst = arith.constant dense<0.000000e+00> : vector<8xf32>
    %37 = vector.multi_reduction <add>, %36, %cst [1] : vector<8x128xf32> to vector<8xf32>
    %38 = vector.shape_cast %37 : vector<8xf32> to vector<8x1xf32>
    %cst_19 = arith.constant 1.280000e+02 : f32
    %39 = vector.broadcast %cst_19 : f32 to vector<8x1xf32>
    %40 = arith.divf %38, %39 : vector<8x1xf32>
    %41 = vector.broadcast %40 : vector<8x1xf32> to vector<8x128xf32>
    %42 = arith.subf %36, %41 : vector<8x128xf32>
    %43 = arith.mulf %42, %42 : vector<8x128xf32>
    %cst_20 = arith.constant dense<0.000000e+00> : vector<8xf32>
    %44 = vector.multi_reduction <add>, %43, %cst_20 [1] : vector<8x128xf32> to vector<8xf32>
    %45 = vector.shape_cast %44 : vector<8xf32> to vector<8x1xf32>
    %cst_21 = arith.constant 1.280000e+02 : f32
    %46 = vector.broadcast %cst_21 : f32 to vector<8x1xf32>
    %47 = arith.divf %45, %46 : vector<8x1xf32>
    %48 = vector.broadcast %40 : vector<8x1xf32> to vector<8x128xf32>
    %49 = arith.subf %36, %48 : vector<8x128xf32>
    %cst_22 = arith.constant 9.99999996E-13 : f32
    %50 = vector.broadcast %cst_22 : f32 to vector<8x1xf32>
    %51 = arith.addf %47, %50 : vector<8x1xf32>
    %52 = math.rsqrt %51 : vector<8x1xf32>
    %53 = vector.broadcast %52 : vector<8x1xf32> to vector<8x128xf32>
    %54 = arith.mulf %49, %53 : vector<8x128xf32>
    %c0_23 = arith.constant 0 : index
    %c0_24 = arith.constant 0 : index
    %55 = vector.load %arg6[%c0_23, %c0_24] : memref<2x128xf32, #tpu.memory_space<vmem>>, vector<2x128xf32>
    %56 = vector.extract_strided_slice %55 {offsets = [0, 0], sizes = [1, 128], strides = [1, 1]} : vector<2x128xf32> to vector<1x128xf32>
    %57 = vector.broadcast %56 : vector<1x128xf32> to vector<8x128xf32>
    %58 = arith.mulf %54, %57 : vector<8x128xf32>
    %59 = vector.extract_strided_slice %55 {offsets = [1, 0], sizes = [1, 128], strides = [1, 1]} : vector<2x128xf32> to vector<1x128xf32>
    %60 = vector.broadcast %59 : vector<1x128xf32> to vector<8x128xf32>
    %61 = arith.addf %58, %60 : vector<8x128xf32>
    %c0_25 = arith.constant 0 : index
    %c0_26 = arith.constant 0 : index
    %62 = vector.load %arg8[%c0_25, %c0_26] : memref<8x128xf32, #tpu.memory_space<vmem>>, vector<8x128xf32>
    tpu.vector_store %arg8[%c0_25, %c0_26], %61 {strides = array<i32>} : memref<8x128xf32, #tpu.memory_space<vmem>>, vector<8x128xf32>,
    return
  }
  func.func @transform_0(%arg0: i32, %arg1: i32, %arg2: memref<2x16xi32, #tpu.memory_space<smem>>) -> (i32, i32) {
    %c2_i32 = arith.constant 2 : i32
    %0 = arith.muli %arg0, %c2_i32 : i32
    %1 = arith.addi %0, %arg1 : i32
    %c0_i32 = arith.constant 0 : i32
    %c0_i32_0 = arith.constant 0 : i32
    return %1, %c0_i32 : i32, i32
  }
  func.func @transform_1(%arg0: i32, %arg1: i32, %arg2: memref<2x16xi32, #tpu.memory_space<smem>>) -> (i32, i32) {
    %c0_i32 = arith.constant 0 : i32
    %c0_i32_0 = arith.constant 0 : i32
    return %arg1, %c0_i32 : i32, i32
  }
  func.func @transform_2(%arg0: i32, %arg1: i32, %arg2: memref<2x16xi32, #tpu.memory_space<smem>>) -> (i32, i32) {
    %c0_i32 = arith.constant 0 : i32
    %c0_i32_0 = arith.constant 0 : i32
    %c0_i32_1 = arith.constant 0 : i32
    return %c0_i32, %c0_i32_0 : i32, i32
  }
  func.func @transform_3(%arg0: i32, %arg1: i32, %arg2: memref<2x16xi32, #tpu.memory_space<smem>>) -> (i32, i32) {
    %c0_i32 = arith.constant 0 : i32
    %c0_i32_0 = arith.constant 0 : i32
    %c0_i32_1 = arith.constant 0 : i32
    return %c0_i32, %c0_i32_0 : i32, i32
  }
  func.func @transform_5(%arg0: i32, %arg1: i32, %arg2: memref<2x16xi32, #tpu.memory_space<smem>>) -> (i32, i32) {
    %c2_i32 = arith.constant 2 : i32
    %0 = arith.muli %arg0, %c2_i32 : i32
    %1 = arith.addi %0, %arg1 : i32
    %c0_i32 = arith.constant 0 : i32
    %c0_i32_0 = arith.constant 0 : i32
    return %1, %c0_i32 : i32, i32
  }
}

</mosaic_0001>

<llo_original>
// kernel: tpu_custom_call.1
$region0: #{tpu_custom_call.1}
  #allocation0 [shape = 'u32[]', space=smem, size = 0x4, offset = 0x4, fixed_abs, tag = 'smem constant byte address 0x4 - core index']
  #allocation1 [shape = 'u32[144,128]{1,0:T(1,128)}', space=vmem, size = 0x12000, scoped, tag = 'internal scratch']
  #allocation2 [shape = 'f32[2,8,128]{2,1,0:T(8,128)}', space=vmem, size = 0x2000, scoped, tag = 'scratch operand']
  #allocation3 [shape = 's32[2]{0}', space=sflag, size = 0x8, scoped, tag = 'scratch operand']
  #allocation4 [shape = 's32[1]{0}', space=sflag, size = 0x4, scoped, tag = 'scoped memory for tpu_custom_call.1']
  #allocation5 [shape = 'u8[1024]{0}', space=smem, size = 0x400, scoped, tag = 'prefetched SMEM operand 0']
  #allocation8 [shape = 's32[]', space=sflag, size = 0x4, offset = 0, fixed_abs, tag = 'sflag constant byte address 0x0 - dummy sync flag']
  #allocation9 [shape = 's32[]', space=sflag, size = 0x4, offset = 0, fixed_abs, tag = 'sflag constant byte address 0x0 - dummy sync flag']
  #allocation10 [shape = 'u32[]', space=smem, size = 0x4, offset = 0x44, fixed_abs, tag = 'smem constant byte address 0x44 - assertion arg 0']
  #allocation11 [shape = 'u32[]', space=smem, size = 0x4, offset = 0x48, fixed_abs, tag = 'smem constant byte address 0x48 - assertion arg 1']
  #allocation12 [shape = 's32[]', space=sflag, size = 0x4, offset = 0, fixed_abs, tag = 'sflag constant byte address 0x0 - dummy sync flag']
  #allocation13 [shape = 's32[]', space=sflag, size = 0x4, offset = 0, fixed_abs, tag = 'sflag constant byte address 0x0 - dummy sync flag']
  %s0 = inlined_call_operand.vmem [shape: s32[2,16], index: 0, kind: input, shape index: {}]
  %s1 = inlined_call_operand.vmem [shape: s32[32,1], index: 1, kind: input, shape index: {}]
  %s2 = inlined_call_operand.vmem [shape: f32[16,128], index: 2, kind: input, shape index: {}]
  %s3 = inlined_call_operand.vmem [shape: f32[2,128], index: 3, kind: input, shape index: {}]
  %s4 = inlined_call_operand.vmem [shape: f32[2,128], index: 4, kind: input, shape index: {}]
  %s5 = inlined_call_operand.hbm [shape: f32[100,128], index: 5, kind: input, shape index: {}]
  %s6 = inlined_call_operand.hbm [shape: f32[32,128], index: 6, kind: output, shape index: {}]
  %s7 = sld [smem:[#allocation0]]
  $region86: #{tpu_custom_call.1} parent=0
    _
  %s9 = ssub.s32 1, %s7
  %s10 = scalar_select 0, %s9, %s7
  %s11 = sshll.u32 %s0, 4
  %s12 = int_to_ptr.vmem [resolvable:$true] %s11
  %14 = dma.vmem_to_smem %s12, 32, [#allocation5], [#allocation4]
  %15 = dma.done [#allocation4], 32
  %16 = sfence
  $region1: #{tpu_custom_call.1} parent=0
    #allocation6 [shape = 'u8[8192]{0}', space=vmem, size = 0x2000, scoped, tag = 'output window, operand 0']
    #allocation7 [shape = 's32[2]{0}', space=sflag, size = 0x8, scoped, tag = 'scoped memory for tpu_custom_call.1']
    %17 = vsyncpa [#allocation7], 0
    %s18 = scalar_lea.sflag [#allocation7], 1
    %19 = vsyncpa %s18, 0
    loop: start=0, step=1, limit=6
    $region2: #{tpu_custom_call.1} parent=1 // loop_pre_header
      _
    $region3: #{tpu_custom_call.1} parent=1 // loop_header
      %s21 = sphi 0, %s25
      %p22 = scmp.ge.s32.totalorder %s21, 6
      %s28 = sphi 0, %s40
      %s29 = sphi 0, %s36
      %s30 = sphi 0, %s28
      %s31 = sphi 0, %s29
      %s32 = sphi 0, %s30
      %s33 = sphi 0, %s31
      %s47 = sphi 0, %s49
      %s50 = sphi 0, %s47
      %s51 = sphi 0, %s50
      %s67 = sphi 0, %s51
      %s73 = sphi 0, %s75
      %s76 = sphi 0, %s73
      %s77 = sphi 0, %s76
      %s93 = sphi 0, %s77
      %s97 = sphi 0, %s97
      %s99 = sphi 0, %s97
      %s100 = sphi 0, %s99
      %s114 = sphi 0, %s100
      %s118 = sphi 0, %s118
      %s120 = sphi 0, %s118
      %s121 = sphi 0, %s120
      %s135 = sphi 0, %s121
      %s145 = sphi 0, %s147
      %s148 = sphi 0, %s145
      %s149 = sphi 0, %s148
      %s165 = sphi 0, %s149
    $region4: #{tpu_custom_call.1} parent=1 // loop_header_branch
      %24 = sbr.rel (%p22) target = $region8
    $region5: #{tpu_custom_call.1} parent=1 // loop_body
      %s26 = ssub.s32 %s21, 1
      %s27 = ssub.s32 %s21, 2
      %s34 = sadd.s32 1, %s29
      %p35 = scmp.ge.s32.totalorder %s34, 2
      %s36 = scalar_select %p35, 0, %s34
      %s37 = sadd.s32 1, %s28
      %s38 = scalar_select %p35, %s37, %s28
      %p39 = scmp.ge.s32.totalorder %s38, 2
      %s40 = scalar_select %p39, 0, %s38
      %s41 = smul.u32 %s28, 2
      %s42 = sadd.s32 %s41, %s29
      %s43 = smul.u32 %s40, 2
      %s44 = sadd.s32 %s43, %s36
      %s45 = ssub.s32 %s42, %s44
      %p46 = scmp.eq.s32.totalorder %s45, 0
      %s48 = sadd.s32 %s47, 1
      %s49 = scalar_select %p46, %s47, %s48
      %p52 = pneg %p46
      %p53 = scmp.eq.s32.totalorder %s21, 3
      %p54 = por %p52, %p53
      %p55 = scmp.ne.s32.totalorder %s47, %s50
      %p56 = scmp.eq.s32.totalorder %s21, 0
      %p57 = por %p55, %p56
      %p58 = scmp.ne.s32.totalorder %s47, %s50
      %p59 = scmp.eq.s32.totalorder %s26, 3
      %p60 = por %p58, %p59
      %p61 = scmp.ne.s32.totalorder %s50, %s51
      %p62 = scmp.eq.s32.totalorder %s26, 0
      %p63 = por %p61, %p62
      %p64 = scmp.ne.s32.totalorder %s50, %s51
      %p65 = scmp.eq.s32.totalorder %s27, 3
      %p66 = por %p64, %p65
      %p68 = scmp.ne.s32.totalorder %s51, %s67
      %p69 = scmp.eq.s32.totalorder %s27, 0
      %p70 = por %p68, %p69
      %s71 = ssub.s32 %s29, %s36
      %p72 = scmp.eq.s32.totalorder %s71, 0
      %s74 = sadd.s32 %s73, 1
      %s75 = scalar_select %p72, %s73, %s74
      %p78 = pneg %p72
      %p79 = scmp.eq.s32.totalorder %s21, 3
      %p80 = por %p78, %p79
      %p81 = scmp.ne.s32.totalorder %s73, %s76
      %p82 = scmp.eq.s32.totalorder %s21, 0
      %p83 = por %p81, %p82
      %p84 = scmp.ne.s32.totalorder %s73, %s76
      %p85 = scmp.eq.s32.totalorder %s26, 3
      %p86 = por %p84, %p85
      %p87 = scmp.ne.s32.totalorder %s76, %s77
      %p88 = scmp.eq.s32.totalorder %s26, 0
      %p89 = por %p87, %p88
      %p90 = scmp.ne.s32.totalorder %s76, %s77
      %p91 = scmp.eq.s32.totalorder %s27, 3
      %p92 = por %p90, %p91
      %p94 = scmp.ne.s32.totalorder %s77, %s93
      %p95 = scmp.eq.s32.totalorder %s27, 0
      %p96 = por %p94, %p95
      %s98 = sadd.s32 %s97, 1
      %p101 = scmp.eq.s32.totalorder %s21, 3
      %p102 = scmp.ne.s32.totalorder %s97, %s99
      %p103 = scmp.eq.s32.totalorder %s21, 0
      %p104 = por %p102, %p103
      %p105 = scmp.ne.s32.totalorder %s97, %s99
      %p106 = scmp.eq.s32.totalorder %s26, 3
      %p107 = por %p105, %p106
      %p108 = scmp.ne.s32.totalorder %s99, %s100
      %p109 = scmp.eq.s32.totalorder %s26, 0
      %p110 = por %p108, %p109
      %p111 = scmp.ne.s32.totalorder %s99, %s100
      %p112 = scmp.eq.s32.totalorder %s27, 3
      %p113 = por %p111, %p112
      %p115 = scmp.ne.s32.totalorder %s100, %s114
      %p116 = scmp.eq.s32.totalorder %s27, 0
      %p117 = por %p115, %p116
      %s119 = sadd.s32 %s118, 1
      %p122 = scmp.eq.s32.totalorder %s21, 3
      %p123 = scmp.ne.s32.totalorder %s118, %s120
      %p124 = scmp.eq.s32.totalorder %s21, 0
      %p125 = por %p123, %p124
      %p126 = scmp.ne.s32.totalorder %s118, %s120
      %p127 = scmp.eq.s32.totalorder %s26, 3
      %p128 = por %p126, %p127
      %p129 = scmp.ne.s32.totalorder %s120, %s121
      %p130 = scmp.eq.s32.totalorder %s26, 0
      %p131 = por %p129, %p130
      %p132 = scmp.ne.s32.totalorder %s120, %s121
      %p133 = scmp.eq.s32.totalorder %s27, 3
      %p134 = por %p132, %p133
      %p136 = scmp.ne.s32.totalorder %s121, %s135
      %p137 = scmp.eq.s32.totalorder %s27, 0
      %p138 = por %p136, %p137
      %s139 = smul.u32 %s28, 2
      %s140 = sadd.s32 %s139, %s29
      %s141 = smul.u32 %s40, 2
      %s142 = sadd.s32 %s141, %s36
      %s143 = ssub.s32 %s140, %s142
      %p144 = scmp.eq.s32.totalorder %s143, 0
      %s146 = sadd.s32 %s145, 1
      %s147 = scalar_select %p144, %s145, %s146
      %p150 = pneg %p144
      %p151 = scmp.eq.s32.totalorder %s21, 3
      %p152 = por %p150, %p151
      %p153 = scmp.ne.s32.totalorder %s145, %s148
      %p154 = scmp.eq.s32.totalorder %s21, 0
      %p155 = por %p153, %p154
      %p156 = scmp.ne.s32.totalorder %s145, %s148
      %p157 = scmp.eq.s32.totalorder %s26, 3
      %p158 = por %p156, %p157
      %p159 = scmp.ne.s32.totalorder %s148, %s149
      %p160 = scmp.eq.s32.totalorder %s26, 0
      %p161 = por %p159, %p160
      %p162 = scmp.ne.s32.totalorder %s148, %s149
      %p163 = scmp.eq.s32.totalorder %s27, 3
      %p164 = por %p162, %p163
      %p166 = scmp.ne.s32.totalorder %s149, %s165
      %p167 = scmp.eq.s32.totalorder %s27, 0
      %p168 = por %p166, %p167
      %p169 = scmp.le.s32.totalorder 1, %s21
      %p170 = scmp.lt.s32.totalorder %s21, 5
      %p171 = pnand %p169, %p170
      %p172 = pneg %p171
      // Predicated region
      $region9: #{tpu_custom_call.1} parent=5 // pred_check
        _
      $region10: #{tpu_custom_call.1} parent=5 // pred_check_branch
        %174 = sbr.rel (%p171) target = $region12
      $region11: #{tpu_custom_call.1} parent=5 // pred_region
        %s175 = ssub.s32 %s21, 1
        // Predicated region
        $region13: #{tpu_custom_call.1} parent=11 // pred_check
          %p176 = pneg %p110
        $region14: #{tpu_custom_call.1} parent=11 // pred_check_branch
          %178 = sbr.rel (%p176) target = $region16
        $region15: #{tpu_custom_call.1} parent=11 // pred_region
          _
        $region16: #{tpu_custom_call.1} parent=11 // pred_fallthru
          _
        // Predicated region
        $region17: #{tpu_custom_call.1} parent=11 // pred_check
          %p179 = pneg %p131
        $region18: #{tpu_custom_call.1} parent=11 // pred_check_branch
          %181 = sbr.rel (%p179) target = $region20
        $region19: #{tpu_custom_call.1} parent=11 // pred_region
          _
        $region20: #{tpu_custom_call.1} parent=11 // pred_fallthru
          _
      $region12: #{tpu_custom_call.1} parent=5 // pred_fallthru
        _
      %p182 = scmp.lt.s32.totalorder %s21, 4
      // Predicated region
      $region21: #{tpu_custom_call.1} parent=5 // pred_check
        %p183 = pneg %p182
      $region22: #{tpu_custom_call.1} parent=5 // pred_check_branch
        %185 = sbr.rel (%p183) target = $region24
      $region23: #{tpu_custom_call.1} parent=5 // pred_region
        // Predicated region
        $region25: #{tpu_custom_call.1} parent=23 // pred_check
          %p186 = pneg %p57
        $region26: #{tpu_custom_call.1} parent=23 // pred_check_branch
          %188 = sbr.rel (%p186) target = $region28
        $region27: #{tpu_custom_call.1} parent=23 // pred_region
          %s189 = smul.u32 %s28, 2
          %s190 = sadd.s32 %s189, %s29
          %p191 = scmp.lt.s32.totalorder %s190, 3
          %s192 = scalar_select %p191, %s190, 3
          %s193 = smul.addr %s192, 8
          %s194 = scalar_lea.vmem %s1, %s193
          %s195 = smul.u32 %s28, 2
          %s196 = sadd.s32 %s195, %s29
        $region28: #{tpu_custom_call.1} parent=23 // pred_fallthru
          _
        // Predicated region
        $region29: #{tpu_custom_call.1} parent=23 // pred_check
          %p197 = pneg %p83
        $region30: #{tpu_custom_call.1} parent=23 // pred_check_branch
          %199 = sbr.rel (%p197) target = $region32
        $region31: #{tpu_custom_call.1} parent=23 // pred_region
          %p200 = scmp.lt.s32.totalorder %s29, 1
          %s201 = scalar_select %p200, %s29, 1
          %s202 = smul.addr %s201, 8
          %s203 = scalar_lea.vmem %s2, %s202
        $region32: #{tpu_custom_call.1} parent=23 // pred_fallthru
          _
      $region24: #{tpu_custom_call.1} parent=5 // pred_fallthru
        _
      %p204 = scmp.le.s32.totalorder 1, %s21
      %p205 = scmp.lt.s32.totalorder %s21, 5
      %p206 = pnand %p204, %p205
      %p207 = pneg %p206
      // Predicated region
      $region33: #{tpu_custom_call.1} parent=5 // pred_check
        _
      $region34: #{tpu_custom_call.1} parent=5 // pred_check_branch
        %209 = sbr.rel (%p206) target = $region36
      $region35: #{tpu_custom_call.1} parent=5 // pred_region
        %s210 = ssub.s32 %s21, 1
        %s211 = smul.u32 %s30, 2
        %s212 = sadd.s32 %s211, %s31
        %p213 = scmp.lt.s32.totalorder %s212, 3
        %s214 = scalar_select %p213, %s212, 3
        %s215 = smul.addr %s214, 8
        %s216 = scalar_lea.vmem %s1, %s215
        %p217 = pneg %p63
        %p218 = pneg %p60
        %p219 = scmp.lt.s32.totalorder %s31, 1
        %s220 = scalar_select %p219, %s31, 1
        %s221 = smul.addr %s220, 8
        %s222 = scalar_lea.vmem %s2, %s221
        %p223 = pneg %p89
        %p224 = pneg %p86
        %p225 = pneg %p110
        %p226 = pneg %p107
        %p227 = pneg %p131
        %p228 = pneg %p128
        %p229 = pneg %p161
        %p230 = pneg %p158
        %s231 = sand.u32 %s148, 1
        %s232 = scalar_lea.sflag [#allocation7], %s231
        %s233 = sand.u32 %s148, 1
        %s234 = smul.addr %s233, 8
        %s235 = scalar_lea.vmem [#allocation6], %s234
        %s236 = smul.u32 %s30, 2
        %s237 = sadd.s32 %s236, %s31
        %p238 = scmp.lt.s32.totalorder %s237, 3
        %s239 = scalar_select %p238, %s237, 3
        %s240 = smul.addr %s239, 8
        %s241 = scalar_lea.vmem %s1, %s240
        %s242 = smul.u32 %s30, 2
        %s243 = sadd.s32 %s242, %s31
        %p244 = scmp.lt.s32.totalorder %s31, 1
        %s245 = scalar_select %p244, %s31, 1
        %s246 = smul.addr %s245, 8
        %s247 = scalar_lea.vmem %s2, %s246
        %s248 = smul.u32 %s30, 2
        %s249 = sadd.s32 %s248, %s31
        %p250 = scmp.lt.s32.totalorder %s31, 0
        %s251 = ssub.s32 0, %s31
        %s252 = scalar_select %p250, %s251, %s31
        %s253 = sand.u32 %s252, 1
        %s254 = ssub.s32 0, %s253
        %s255 = scalar_select %p250, %s254, %s253
        %p256 = scmp.ne.s32.totalorder %s255, 0
        %p257 = scmp.lt.s32.totalorder %s255, 0
        %p258 = pnand %p257, %p256
        %p259 = pneg %p258
        %s260 = sadd.s32 %s255, 2
        %s261 = scalar_select %p259, %s260, %s255
        %p262 = scmp.eq.s32.totalorder %s31, 0
        // Predicated region
        $region37: #{tpu_custom_call.1} parent=35 // pred_check
          %p263 = pneg %p262
        $region38: #{tpu_custom_call.1} parent=35 // pred_check_branch
          %265 = sbr.rel (%p263) target = $region40
        $region39: #{tpu_custom_call.1} parent=35 // pred_region
          loop: start=0, step=1, limit=8
          $region41: #{tpu_custom_call.1} parent=39 // loop_pre_header
            _
          $region42: #{tpu_custom_call.1} parent=39 // loop_header
            %s267 = sphi 0, %s271
            %p268 = scmp.ge.s32.totalorder %s267, 8
          $region43: #{tpu_custom_call.1} parent=39 // loop_header_branch
            %270 = sbr.rel (%p268) target = $region47
          $region44: #{tpu_custom_call.1} parent=39 // loop_body
            %s272 = sshra.s32 %s267, 7
            %s273 = sand.u32 %s267, 127
            %s274 = sadd.s32 %s272, %s30
            %s275 = smul.u32 %s274, 128
            %s276 = sshra.s32 %s267, 7
            %s277 = sand.u32 %s267, 127
            %s278 = sadd.s32 %s275, %s277
            %s279 = sld [smem:[#allocation5 + %s278]]
            %s280 = smul.addr %s279, 16
            %s281 = scalar_lea.hbm %s5, %s280
            %s282 = scalar_lea.vmem [#allocation2], %s267
            // Predicated region
            $region48: #{tpu_custom_call.1} parent=44 // pred_check
              _
            $region49: #{tpu_custom_call.1} parent=44 // pred_check_branch
              %284 = sbr.rel target = $region51
            $region50: #{tpu_custom_call.1} parent=44 // pred_region
              %285 = sst [smem:[#allocation10]] [#allocation9]
              %286 = sst [smem:[#allocation11]] [#allocation8]
            $region51: #{tpu_custom_call.1} parent=44 // pred_fallthru
              _
            %288 = shalt.err (0)
            %s290 = sshll.u32 %s282, 4
            %s291 = int_to_ptr.vmem [resolvable:$true] %s290
            %293 = dma.hbm_to_vmem [thread:$0]  %s281, 16, %s291, [#allocation3]
          $region45: #{tpu_custom_call.1} parent=39 // loop_footer
            %s271 = sadd.s32 1, %s267
          $region46: #{tpu_custom_call.1} parent=39 // loop_footer_branch
            %266 = sbr.rel target = $region42
          $region47: #{tpu_custom_call.1} parent=39 // loop_exit
            _
        $region40: #{tpu_custom_call.1} parent=35 // pred_fallthru
          _
        %s294 = sadd.s32 %s31, 1
        %p295 = scmp.lt.s32.totalorder %s294, 2
        // Predicated region
        $region52: #{tpu_custom_call.1} parent=35 // pred_check
          %p296 = pneg %p295
        $region53: #{tpu_custom_call.1} parent=35 // pred_check_branch
          %298 = sbr.rel (%p296) target = $region55
        $region54: #{tpu_custom_call.1} parent=35 // pred_region
          %s299 = ssub.s32 1, %s261
          %s300 = smul.u32 %s294, 8
          loop: start=0, step=1, limit=8
          $region56: #{tpu_custom_call.1} parent=54 // loop_pre_header
            _
          $region57: #{tpu_custom_call.1} parent=54 // loop_header
            %s302 = sphi 0, %s306
            %p303 = scmp.ge.s32.totalorder %s302, 8
          $region58: #{tpu_custom_call.1} parent=54 // loop_header_branch
            %305 = sbr.rel (%p303) target = $region62
          $region59: #{tpu_custom_call.1} parent=54 // loop_body
            %s307 = sadd.s32 %s300, %s302
            %s308 = sshra.s32 %s307, 7
            %s309 = sand.u32 %s307, 127
            %s310 = sadd.s32 %s308, %s30
            %s311 = smul.u32 %s310, 128
            %s312 = sshra.s32 %s307, 7
            %s313 = sand.u32 %s307, 127
            %s314 = sadd.s32 %s311, %s313
            %s315 = sld [smem:[#allocation5 + %s314]]
            %s316 = smul.addr %s315, 16
            %s317 = scalar_lea.hbm %s5, %s316
            %s318 = smul.u32 %s299, 8
            %s319 = sadd.s32 %s302, %s318
            %s320 = scalar_lea.vmem [#allocation2], %s319
            %s321 = scalar_lea.sflag [#allocation3], %s299
            // Predicated region
            $region63: #{tpu_custom_call.1} parent=59 // pred_check
              _
            $region64: #{tpu_custom_call.1} parent=59 // pred_check_branch
              %323 = sbr.rel target = $region66
            $region65: #{tpu_custom_call.1} parent=59 // pred_region
              %324 = sst [smem:[#allocation10]] [#allocation13]
              %325 = sst [smem:[#allocation11]] [#allocation12]
            $region66: #{tpu_custom_call.1} parent=59 // pred_fallthru
              _
            %327 = shalt.err (0)
            %s329 = sshll.u32 %s320, 4
            %s330 = int_to_ptr.vmem [resolvable:$true] %s329
            %332 = dma.hbm_to_vmem [thread:$0]  %s317, 16, %s330, %s321
          $region60: #{tpu_custom_call.1} parent=54 // loop_footer
            %s306 = sadd.s32 1, %s302
          $region61: #{tpu_custom_call.1} parent=54 // loop_footer_branch
            %301 = sbr.rel target = $region57
          $region62: #{tpu_custom_call.1} parent=54 // loop_exit
            _
        $region55: #{tpu_custom_call.1} parent=35 // pred_fallthru
          _
        loop: start=0, step=1, limit=8
        $region67: #{tpu_custom_call.1} parent=35 // loop_pre_header
          _
        $region68: #{tpu_custom_call.1} parent=35 // loop_header
          %s334 = sphi 0, %s338
          %p335 = scmp.ge.s32.totalorder %s334, 8
        $region69: #{tpu_custom_call.1} parent=35 // loop_header_branch
          %337 = sbr.rel (%p335) target = $region73
        $region70: #{tpu_custom_call.1} parent=35 // loop_body
          %s339 = scalar_lea.sflag [#allocation3], %s261
          %s340 = smul.u32 1, 1
          %s341 = sshll.u32 %s340, 4
          %342 = dma.done %s339, %s341
        $region71: #{tpu_custom_call.1} parent=35 // loop_footer
          %s338 = sadd.s32 1, %s334
        $region72: #{tpu_custom_call.1} parent=35 // loop_footer_branch
          %333 = sbr.rel target = $region68
        $region73: #{tpu_custom_call.1} parent=35 // loop_exit
          _
        %s343 = smul.u32 %s261, 8
        %s344 = scalar_lea.vmem [#allocation2], %s343
        %v345 = vld [vmem:[%s344] sm:$0xff]
        %v346 = vld [vmem:[%s247] sm:$0xff]
        %v347 = vadd.f32 %v345, %v346
        %v348 = vld [vmem:[%s241] sm:$0xff]
        %v349 = vld [vmem:[%s3] sm:$0x3]
        %vm350 = vcmp.eq.s32.totalorder %v348, 0
        %v351 = vsel %vm350, 1, 0
        %352 = vset.pattern.permute.xlu0 0
        %353 = vperm.xlu0 %352, %v351
        %v354 = vpop.permute.xlu0 %353
        %vm355 = vcmp.eq.s32.totalorder %v354, 1
        %v356 = vlaneseq
        %v357 = vshrl.u32 %v356, 7
        %v358 = vsub.s32 0, %v357
        %v359 = vrot.slane %v349, %v358
        %v360 = vlaneseq
        %v361 = vshrl.u32 %v360, 7
        %v362 = vsub.s32 1, %v361
        %v363 = vrot.slane %v349, %v362
        %v364 = vsel %vm355, %v359, %v363
        %v365 = vadd.f32 %v347, %v364
        %366 = vadd.xlane.f32.xlu0 %v365
        %v367 = vpop.xlane.xlu0 %366
        %v368 = vrcp.pop 128.0
        %v369 = vmul.f32 %v367, %v368
        %v370 = vsub.f32 %v365, %v369
        %v371 = vmul.f32 %v370, %v370
        %372 = vadd.xlane.f32.xlu0 %v371
        %v373 = vpop.xlane.xlu0 %372
        %v374 = vmul.f32 %v373, %v368
        %v375 = vadd.f32 %v374, 1e-12
        %v376 = vrsqrt.pop %v375
        %v377 = vmul.f32 %v370, %v376
        %v378 = vld [vmem:[%s4] sm:$0x3]
        %v379 = vlaneseq
        %v380 = vshrl.u32 %v379, 7
        %v381 = vsub.s32 0, %v380
        %v382 = vrot.slane %v378, %v381
        %v383 = vmul.f32 %v377, %v382
        %v384 = vlaneseq
        %v385 = vshrl.u32 %v384, 7
        %v386 = vsub.s32 1, %v385
        %v387 = vrot.slane %v378, %v386
        %v388 = vadd.f32 %v383, %v387
        %389 = vst [vmem:[%s235] sm:$0xff] %v388
        %s390 = sand.u32 %s148, 1
        %s391 = scalar_lea.sflag [#allocation7], %s390
        %s392 = sand.u32 %s148, 1
        %s393 = smul.addr %s392, 8
        %s394 = scalar_lea.vmem [#allocation6], %s393
        // Predicated region
        $region74: #{tpu_custom_call.1} parent=35 // pred_check
          %p395 = pneg %p158
        $region75: #{tpu_custom_call.1} parent=35 // pred_check_branch
          %397 = sbr.rel (%p395) target = $region77
        $region76: #{tpu_custom_call.1} parent=35 // pred_region
          %s398 = smul.u32 %s30, 2
          %s399 = sadd.s32 %s398, %s31
          %s401 = ssub.s32 128, 128
          %402 = vsyncadd %s391, %s401
          %s403 = smul.addr %s399, 128
          %s404 = scalar_lea.hbm %s6, %s403
          %s406 = sshll.u32 %s394, 4
          %s407 = int_to_ptr.vmem [resolvable:$true] %s406
          %409 = dma.vmem_to_hbm [thread:$0]  %s407, 128, %s404, %s391
        $region77: #{tpu_custom_call.1} parent=35 // pred_fallthru
          _
      $region36: #{tpu_custom_call.1} parent=5 // pred_fallthru
        _
      %p410 = scmp.le.s32.totalorder 2, %s21
      // Predicated region
      $region78: #{tpu_custom_call.1} parent=5 // pred_check
        %p411 = pneg %p410
      $region79: #{tpu_custom_call.1} parent=5 // pred_check_branch
        %413 = sbr.rel (%p411) target = $region81
      $region80: #{tpu_custom_call.1} parent=5 // pred_region
        %s414 = ssub.s32 %s21, 2
        // Predicated region
        $region82: #{tpu_custom_call.1} parent=80 // pred_check
          %p415 = pneg %p164
        $region83: #{tpu_custom_call.1} parent=80 // pred_check_branch
          %417 = sbr.rel (%p415) target = $region85
        $region84: #{tpu_custom_call.1} parent=80 // pred_region
          %s418 = sand.u32 %s149, 1
          %s419 = scalar_lea.sflag [#allocation7], %s418
          %s420 = sand.u32 %s149, 1
          %s421 = smul.addr %s420, 8
          %s422 = scalar_lea.vmem [#allocation6], %s421
          %423 = dma.done %s419, 128
        $region85: #{tpu_custom_call.1} parent=80 // pred_fallthru
          _
      $region81: #{tpu_custom_call.1} parent=5 // pred_fallthru
        _
    $region6: #{tpu_custom_call.1} parent=1 // loop_footer
      %s25 = sadd.s32 1, %s21
    $region7: #{tpu_custom_call.1} parent=1 // loop_footer_branch
      %20 = sbr.rel target = $region3
    $region8: #{tpu_custom_call.1} parent=1 // loop_exit
      _
    %424 = vsyncpa [#allocation7], 1
    %s425 = scalar_lea.sflag [#allocation7], 1
    %426 = vsyncpa %s425, 1
  %427 = vsyncmov [#allocation3]
  %s428 = vpop.sfrf %427
  %p429 = scmp.eq.s32.totalorder %s428, 0
  %p430 = pneg %p429
  %432 = shalt.err (%p430)
  %s433 = scalar_lea.sflag [#allocation3], 1
  %434 = vsyncmov %s433
  %s435 = vpop.sfrf %434
  %p436 = scmp.eq.s32.totalorder %s435, 0
  %p437 = pneg %p436
  %439 = shalt.err (%p437)

</llo_original>
